<compile_context>
chip_gen: v5e
topology: v5e:2x2
jax: 0.10.0
libtpu: 0.0.40
codegen_flags: <defaults>
</compile_context>

<pallas_src>
import jax
import jax.numpy as jnp
from jax.experimental import pallas as pl
from jax.experimental.pallas import tpu as pltpu

ALPHA = 0.3
BETA = 0.7
GAMMA = 1.33
SMOOTH = 1e-6


def _fold_lanes(v, fold):
    """Sum lane-aligned 128-multiple strips of width `fold` (VPU adds only)."""
    t = v.shape[-1]
    acc = v[:, 0:fold]
    for k in range(1, t // fold):
        acc = acc + v[:, k * fold:(k + 1) * fold]
    return acc


def _make_kernel(fold, n_pad, tile_px):
    valid_last = tile_px - n_pad  # valid lanes in the single padded tile

    def kernel(preds_ref, tgt_ref, tp_ref, s_ref, cnt_ref, acc_tp, acc_s, acc_cnt):
        j = pl.program_id(2)  # pixel-tile (streaming reduction) axis
        _, C, T = preds_ref.shape

        @pl.when(j == 0)
        def _init():
            acc_tp[...] = jnp.zeros_like(acc_tp)
            acc_s[...] = jnp.zeros_like(acc_s)
            acc_cnt[...] = jnp.zeros_like(acc_cnt)

        # Logits tile: classes on sublanes, pixels on lanes; upcast after load
        # so bf16 inputs keep halved HBM traffic while math runs in f32.
        x = preds_ref[0].astype(jnp.float32)                   # (C, T)
        x = x - jnp.max(x, axis=0, keepdims=True)               # stable softmax
        e = jnp.exp(x)
        denom = jnp.sum(e, axis=0, keepdims=True)                # (1, T)
        p = e * pl.reciprocal(denom, approx=True)                # EUP reciprocal

        t = tgt_ref[0]                                           # (1, T) int32
        cls = jax.lax.broadcasted_iota(jnp.int32, (C, 1), 0)     # (C, 1)
        eq = cls == t                                            # (C, T) bool

        # TP / CNT: padded pixels carry target class == C (never matches any
        # real class), so these never need masking.
        acc_tp[...] += _fold_lanes(jnp.where(eq, p, 0.0), fold)
        acc_cnt[...] += _fold_lanes(jnp.where(eq, 1.0, 0.0), fold)

        # S = sum(p): only the very last pixel tile can hold padded lanes.
        if n_pad == 0:
            acc_s[...] += _fold_lanes(p, fold)
        else:
            is_pad_tile = jnp.logical_and(
                pl.program_id(1) == pl.num_programs(1) - 1,
                j == pl.num_programs(2) - 1)

            @pl.when(is_pad_tile)
            def _s_masked():
                col = jax.lax.broadcasted_iota(jnp.int32, (1, T), 1)
                acc_s[...] += _fold_lanes(jnp.where(col < valid_last, p, 0.0), fold)

            @pl.when(jnp.logical_not(is_pad_tile))
            def _s_full():
                acc_s[...] += _fold_lanes(p, fold)

        @pl.when(j == pl.num_programs(2) - 1)
        def _finalize():
            tp_ref[0, 0] = jnp.sum(acc_tp[...], axis=1, keepdims=True)
            s_ref[0, 0] = jnp.sum(acc_s[...], axis=1, keepdims=True)
            cnt_ref[0, 0] = jnp.sum(acc_cnt[...], axis=1, keepdims=True)

    return kernel


def _pick_tile_px(C, hw, itemsize, vmem_budget_bytes, max_tile=16384):
    """Largest pixel tile (multiple of 128 lanes) within a conservative budget.

    Counts double-buffered preds and int32 targets tiles with sublane padding
    (second-to-last dim pads to at least 8).  The (C, FOLD) accumulators are
    tile-size independent and tiny.  The cap keeps the footprint well inside
    every generation's default scoped VMEM (v7x has only 64 MiB physical).
    """
    c_pad = max(8, ((C + 7) // 8) * 8)
    bytes_per_px = 2 * c_pad * itemsize + 2 * 8 * 4
    t = (vmem_budget_bytes // bytes_per_px) // 128 * 128
    t = max(128, min(int(t), max_tile))
    hw128 = ((hw + 127) // 128) * 128
    return min(t, hw128)


def focal_tversky_loss(preds, targets, *, alpha=ALPHA, beta=BETA, gamma=GAMMA,
                       smooth=SMOOTH, vmem_budget_bytes=6 * 1024 * 1024):
    """preds: (N, C, H, W) float, targets: (N, H, W) int -> scalar f32 loss."""
    N, C, H, W = preds.shape
    HW = H * W

    # Free reshapes only: pixels go to the lane axis.
    preds3d = preds.reshape(N, C, HW)
    tgt3d = targets.reshape(N, 1, HW).astype(jnp.int32)

    itemsize = jnp.dtype(preds.dtype).itemsize
    tile_px = _pick_tile_px(C, HW, itemsize, vmem_budget_bytes)

    # Pad the pixel axis to a whole number of tiles so no block ever reads
    # undefined VMEM lanes.  Padded logits are zero; padded targets get the
    # out-of-range class C so they never match any real class; the extra
    # softmax mass in S is masked out on the (single) padded tile in-kernel.
    HWp = ((HW + tile_px - 1) // tile_px) * tile_px
    n_pad = HWp - HW
    if n_pad:
        preds3d = jnp.pad(preds3d, ((0, 0), (0, 0), (0, n_pad)))
        tgt3d = jnp.pad(tgt3d, ((0, 0), (0, 0), (0, n_pad)), constant_values=C)

    total_tiles = HWp // tile_px
    # Pixel-chunk parallelism: keeps both v7x TensorCores busy when the batch
    # axis alone cannot (odd / unit N); neutral on single-core v5e/v6e.
    n_chunks = 2 if (N % 2 == 1 and total_tiles % 2 == 0) else 1
    tiles_per_chunk = total_tiles // n_chunks

    # Register-level lane-fold width (narrow accumulators, one RMW per tile).
    fold = 512
    while tile_px % fold:
        fold //= 2

    grid = (N, n_chunks, tiles_per_chunk)
    out_shape = jax.ShapeDtypeStruct((N, n_chunks, C, 1), jnp.float32)
    out_spec = pl.BlockSpec((1, 1, C, 1), lambda n, c, j: (n, c, 0, 0))
    px_map = lambda n, c, j: (n, 0, c * tiles_per_chunk + j)

    tp, s, cnt = pl.pallas_call(
        _make_kernel(fold, n_pad, tile_px),
        out_shape=(out_shape, out_shape, out_shape),
        grid_spec=pltpu.PrefetchScalarGridSpec(
            num_scalar_prefetch=0,
            grid=grid,
            in_specs=[
                pl.BlockSpec((1, C, tile_px), px_map),
                pl.BlockSpec((1, 1, tile_px), px_map),
            ],
            out_specs=(out_spec, out_spec, out_spec),
            scratch_shapes=[
                pltpu.VMEM((C, fold), jnp.float32),  # TP accumulator
                pltpu.VMEM((C, fold), jnp.float32),  # sum(p) accumulator
                pltpu.VMEM((C, fold), jnp.float32),  # class-count accumulator
            ],
        ),
        compiler_params=pltpu.CompilerParams(
            dimension_semantics=("parallel", "parallel", "arbitrary"),
        ),
    )(preds3d, tgt3d)

    # Tiny epilogue in plain JAX.  Clamp FP/FN (and 1 - tversky) at 0 so f32
    # rounding can never push tversky above 1 and NaN the fractional power.
    TP = jnp.sum(tp, axis=(0, 1))[:, 0]
    S = jnp.sum(s, axis=(0, 1))[:, 0]
    CNT = jnp.sum(cnt, axis=(0, 1))[:, 0]
    FP = jnp.maximum(S - TP, 0.0)
    FN = jnp.maximum(CNT - TP, 0.0)
    tversky = (TP + smooth) / (TP + alpha * FP + beta * FN + smooth)
    return jnp.mean(jnp.power(jnp.maximum(1.0 - tversky, 0.0), gamma))


def _reference_loss(preds, targets, alpha=ALPHA, beta=BETA, gamma=GAMMA, smooth=SMOOTH):
    """Pure-JAX reference mirroring the PyTorch module."""
    num_classes = preds.shape[1]
    p = jax.nn.softmax(preds.astype(jnp.float32), axis=1)
    onehot = jax.nn.one_hot(targets, num_classes, dtype=jnp.float32)
    onehot = jnp.transpose(onehot, (0, 3, 1, 2))
    TP = jnp.sum(p * onehot, axis=(0, 2, 3))
    FP = jnp.sum(p * (1.0 - onehot), axis=(0, 2, 3))
    FN = jnp.sum((1.0 - p) * onehot, axis=(0, 2, 3))
    tversky = (TP + smooth) / (TP + alpha * FP + beta * FN + smooth)
    return jnp.mean(jnp.power(1.0 - tversky, gamma))


if __name__ == "__main__":
    key = jax.random.PRNGKey(0)

    # Case 1: canonical small shape, no padding, batch-parallel grid.
    k1, k2, k3, k4 = jax.random.split(key, 4)
    N, C, H, W = 2, 4, 16, 16
    preds = jax.random.normal(k1, (N, C, H, W), dtype=jnp.float32)
    targets = jax.random.randint(k2, (N, H, W), 0, C, dtype=jnp.int32)
    loss = jax.block_until_ready(focal_tversky_loss(preds, targets))
    ref = jax.block_until_ready(_reference_loss(preds, targets))
    assert jnp.isfinite(loss), loss
    assert jnp.allclose(loss, ref, rtol=1e-3, atol=1e-6), (loss, ref)

    # Case 2: odd batch, C=3, non-multiple-of-128 pixel count -> exercises the
    # padded-tile mask, multi-tile streaming and the pixel-chunk parallel axis
    # (tiny VMEM budget forces tile_px=128, 4 tiles, 2 chunks).
    N2, C2, H2, W2 = 1, 3, 20, 20
    preds2 = jax.random.normal(k3, (N2, C2, H2, W2), dtype=jnp.float32)
    targets2 = jax.random.randint(k4, (N2, H2, W2), 0, C2, dtype=jnp.int32)
    loss2 = jax.block_until_ready(
        focal_tversky_loss(preds2, targets2, vmem_budget_bytes=16 * 1024))
    ref2 = jax.block_until_ready(_reference_loss(preds2, targets2))
    assert jnp.isfinite(loss2), loss2
    assert jnp.allclose(loss2, ref2, rtol=1e-3, atol=1e-6), (loss2, ref2)

    print("KERNEL_OK")
</pallas_src>

<mosaic_0001>
module attributes {stable_mosaic.version = 11 : i64} {
  func.func @kernel(%arg0: i32, %arg1: i32, %arg2: i32, %arg3: memref<1x4x256xf32, #tpu.memory_space<vmem>>, %arg4: memref<1x1x256xi32, #tpu.memory_space<vmem>>, %arg5: memref<1x1x4x1xf32, #tpu.memory_space<vmem>>, %arg6: memref<1x1x4x1xf32, #tpu.memory_space<vmem>>, %arg7: memref<1x1x4x1xf32, #tpu.memory_space<vmem>>, %arg8: memref<4x256xf32, #tpu.memory_space<vmem>>, %arg9: memref<4x256xf32, #tpu.memory_space<vmem>>, %arg10: memref<4x256xf32, #tpu.memory_space<vmem>>) attributes {dimension_semantics = [#tpu.dimension_semantics<parallel>, #tpu.dimension_semantics<parallel>, #tpu.dimension_semantics<arbitrary>], iteration_bounds = array<i64: 2, 1, 1>, scalar_prefetch = 0 : i64, scratch_operands = 3 : i64, tpu.core_type = #tpu.core_type<tc>, window_params = [{transform_indices = @transform_0, window_bounds = array<i64: 1, 4, 256>}, {transform_indices = @transform_1, window_bounds = array<i64: 1, 1, 256>}, {transform_indices = @transform_2, window_bounds = array<i64: 1, 1, 4, 1>}, {transform_indices = @transform_3, window_bounds = array<i64: 1, 1, 4, 1>}, {transform_indices = @transform_4, window_bounds = array<i64: 1, 1, 4, 1>}]} {
    %c0_i32 = arith.constant 0 : i32
    %0 = arith.cmpi eq, %arg2, %c0_i32 : i32
    %1 = arith.extui %0 : i1 to i32
    %c0_i32_0 = arith.constant 0 : i32
    %2 = arith.cmpi ne, %1, %c0_i32_0 : i32
    scf.if %2 {
      %cst_24 = arith.constant 0.000000e+00 : f32
      %38 = vector.broadcast %cst_24 : f32 to vector<4x256xf32>
      %c0_25 = arith.constant 0 : index
      %c0_26 = arith.constant 0 : index
      %39 = vector.load %arg8[%c0_25, %c0_26] : memref<4x256xf32, #tpu.memory_space<vmem>>, vector<4x256xf32>
      tpu.vector_store %arg8[%c0_25, %c0_26], %38 {strides = array<i32>} : memref<4x256xf32, #tpu.memory_space<vmem>>, vector<4x256xf32>,
      %cst_27 = arith.constant 0.000000e+00 : f32
      %40 = vector.broadcast %cst_27 : f32 to vector<4x256xf32>
      %c0_28 = arith.constant 0 : index
      %c0_29 = arith.constant 0 : index
      %41 = vector.load %arg9[%c0_28, %c0_29] : memref<4x256xf32, #tpu.memory_space<vmem>>, vector<4x256xf32>
      tpu.vector_store %arg9[%c0_28, %c0_29], %40 {strides = array<i32>} : memref<4x256xf32, #tpu.memory_space<vmem>>, vector<4x256xf32>,
      %cst_30 = arith.constant 0.000000e+00 : f32
      %42 = vector.broadcast %cst_30 : f32 to vector<4x256xf32>
      %c0_31 = arith.constant 0 : index
      %c0_32 = arith.constant 0 : index
      %43 = vector.load %arg10[%c0_31, %c0_32] : memref<4x256xf32, #tpu.memory_space<vmem>>, vector<4x256xf32>
      tpu.vector_store %arg10[%c0_31, %c0_32], %42 {strides = array<i32>} : memref<4x256xf32, #tpu.memory_space<vmem>>, vector<4x256xf32>,
    } else {
    }
    %c0 = arith.constant 0 : index
    %c0_1 = arith.constant 0 : index
    %c0_2 = arith.constant 0 : index
    %3 = vector.load %arg3[%c0, %c0_1, %c0_2] : memref<1x4x256xf32, #tpu.memory_space<vmem>>, vector<1x4x256xf32>
    %4 = vector.shape_cast %3 : vector<1x4x256xf32> to vector<4x256xf32>
    %cst = arith.constant dense<0xFF800000> : vector<256xf32>
    %5 = vector.multi_reduction <maximumf>, %4, %cst [0] : vector<4x256xf32> to vector<256xf32>
    %6 = vector.shape_cast %5 : vector<256xf32> to vector<1x256xf32>
    %7 = vector.broadcast %6 : vector<1x256xf32> to vector<4x256xf32>
    %8 = arith.subf %4, %7 : vector<4x256xf32>
    %9 = math.exp %8 : vector<4x256xf32>
    %cst_3 = arith.constant dense<0.000000e+00> : vector<256xf32>
    %10 = vector.multi_reduction <add>, %9, %cst_3 [0] : vector<4x256xf32> to vector<256xf32>
    %11 = vector.shape_cast %10 : vector<256xf32> to vector<1x256xf32>
    %12 = tpu.reciprocal %11 {approx = true} : vector<1x256xf32> -> vector<1x256xf32>
    %13 = vector.broadcast %12 : vector<1x256xf32> to vector<4x256xf32>
    %14 = arith.mulf %9, %13 : vector<4x256xf32>
    %c0_4 = arith.constant 0 : index
    %c0_5 = arith.constant 0 : index
    %c0_6 = arith.constant 0 : index
    %15 = vector.load %arg4[%c0_4, %c0_5, %c0_6] : memref<1x1x256xi32, #tpu.memory_space<vmem>>, vector<1x1x256xi32>
    %16 = vector.shape_cast %15 : vector<1x1x256xi32> to vector<1x256xi32>
    %17 = tpu.iota {dimensions = array<i32: 0>} : vector<4x1xi32>
    %18 = vector.broadcast %17 : vector<4x1xi32> to vector<4x256xi32>
    %19 = vector.broadcast %16 : vector<1x256xi32> to vector<4x256xi32>
    %20 = arith.cmpi eq, %18, %19 : vector<4x256xi32>
    %c0_7 = arith.constant 0 : index
    %c0_8 = arith.constant 0 : index
    %21 = vector.load %arg8[%c0_7, %c0_8] : memref<4x256xf32, #tpu.memory_space<vmem>>, vector<4x256xf32>
    %cst_9 = arith.constant 0.000000e+00 : f32
    %22 = vector.broadcast %cst_9 : f32 to vector<4x256xf32>
    %23 = arith.select %20, %14, %22 : vector<4x256xi1>, vector<4x256xf32>
    %24 = arith.addf %21, %23 : vector<4x256xf32>
    %c0_10 = arith.constant 0 : index
    %c0_11 = arith.constant 0 : index
    %25 = vector.load %arg8[%c0_10, %c0_11] : memref<4x256xf32, #tpu.memory_space<vmem>>, vector<4x256xf32>
    tpu.vector_store %arg8[%c0_10, %c0_11], %24 {strides = array<i32>} : memref<4x256xf32, #tpu.memory_space<vmem>>, vector<4x256xf32>,
    %c0_12 = arith.constant 0 : index
    %c0_13 = arith.constant 0 : index
    %26 = vector.load %arg10[%c0_12, %c0_13] : memref<4x256xf32, #tpu.memory_space<vmem>>, vector<4x256xf32>
    %cst_14 = arith.constant 1.000000e+00 : f32
    %cst_15 = arith.constant 0.000000e+00 : f32
    %27 = vector.broadcast %cst_14 : f32 to vector<4x256xf32>
    %28 = vector.broadcast %cst_15 : f32 to vector<4x256xf32>
    %29 = arith.select %20, %27, %28 : vector<4x256xi1>, vector<4x256xf32>
    %30 = arith.addf %26, %29 : vector<4x256xf32>
    %c0_16 = arith.constant 0 : index
    %c0_17 = arith.constant 0 : index
    %31 = vector.load %arg10[%c0_16, %c0_17] : memref<4x256xf32, #tpu.memory_space<vmem>>, vector<4x256xf32>
    tpu.vector_store %arg10[%c0_16, %c0_17], %30 {strides = array<i32>} : memref<4x256xf32, #tpu.memory_space<vmem>>, vector<4x256xf32>,
    %c0_18 = arith.constant 0 : index
    %c0_19 = arith.constant 0 : index
    %32 = vector.load %arg9[%c0_18, %c0_19] : memref<4x256xf32, #tpu.memory_space<vmem>>, vector<4x256xf32>
    %33 = arith.addf %32, %14 : vector<4x256xf32>
    %c0_20 = arith.constant 0 : index
    %c0_21 = arith.constant 0 : index
    %34 = vector.load %arg9[%c0_20, %c0_21] : memref<4x256xf32, #tpu.memory_space<vmem>>, vector<4x256xf32>
    tpu.vector_store %arg9[%c0_20, %c0_21], %33 {strides = array<i32>} : memref<4x256xf32, #tpu.memory_space<vmem>>, vector<4x256xf32>,
    %c0_i32_22 = arith.constant 0 : i32
    %35 = arith.cmpi eq, %arg2, %c0_i32_22 : i32
    %36 = arith.extui %35 : i1 to i32
    %c0_i32_23 = arith.constant 0 : i32
    %37 = arith.cmpi ne, %36, %c0_i32_23 : i32
    scf.if %37 {
      %c0_24 = arith.constant 0 : index
      %c0_25 = arith.constant 0 : index
      %38 = vector.load %arg8[%c0_24, %c0_25] : memref<4x256xf32, #tpu.memory_space<vmem>>, vector<4x256xf32>
      %cst_26 = arith.constant dense<0.000000e+00> : vector<4xf32>
      %39 = vector.multi_reduction <add>, %38, %cst_26 [1] : vector<4x256xf32> to vector<4xf32>
      %40 = vector.shape_cast %39 : vector<4xf32> to vector<4x1xf32>
      %c0_27 = arith.constant 0 : index
      %c0_28 = arith.constant 0 : index
      %c0_29 = arith.constant 0 : index
      %c0_30 = arith.constant 0 : index
      %41 = vector.load %arg5[%c0_27, %c0_28, %c0_29, %c0_30] : memref<1x1x4x1xf32, #tpu.memory_space<vmem>>, vector<1x1x4x1xf32>
      %42 = vector.shape_cast %41 : vector<1x1x4x1xf32> to vector<4x1xf32>
      %43 = vector.shape_cast %40 : vector<4x1xf32> to vector<1x1x4x1xf32>
      tpu.vector_store %arg5[%c0_27, %c0_28, %c0_29, %c0_30], %43 {strides = array<i32>} : memref<1x1x4x1xf32, #tpu.memory_space<vmem>>, vector<1x1x4x1xf32>,
      %c0_31 = arith.constant 0 : index
      %c0_32 = arith.constant 0 : index
      %44 = vector.load %arg9[%c0_31, %c0_32] : memref<4x256xf32, #tpu.memory_space<vmem>>, vector<4x256xf32>
      %cst_33 = arith.constant dense<0.000000e+00> : vector<4xf32>
      %45 = vector.multi_reduction <add>, %44, %cst_33 [1] : vector<4x256xf32> to vector<4xf32>
      %46 = vector.shape_cast %45 : vector<4xf32> to vector<4x1xf32>
      %c0_34 = arith.constant 0 : index
      %c0_35 = arith.constant 0 : index
      %c0_36 = arith.constant 0 : index
      %c0_37 = arith.constant 0 : index
      %47 = vector.load %arg6[%c0_34, %c0_35, %c0_36, %c0_37] : memref<1x1x4x1xf32, #tpu.memory_space<vmem>>, vector<1x1x4x1xf32>
      %48 = vector.shape_cast %47 : vector<1x1x4x1xf32> to vector<4x1xf32>
      %49 = vector.shape_cast %46 : vector<4x1xf32> to vector<1x1x4x1xf32>
      tpu.vector_store %arg6[%c0_34, %c0_35, %c0_36, %c0_37], %49 {strides = array<i32>} : memref<1x1x4x1xf32, #tpu.memory_space<vmem>>, vector<1x1x4x1xf32>,
      %c0_38 = arith.constant 0 : index
      %c0_39 = arith.constant 0 : index
      %50 = vector.load %arg10[%c0_38, %c0_39] : memref<4x256xf32, #tpu.memory_space<vmem>>, vector<4x256xf32>
      %cst_40 = arith.constant dense<0.000000e+00> : vector<4xf32>
      %51 = vector.multi_reduction <add>, %50, %cst_40 [1] : vector<4x256xf32> to vector<4xf32>
      %52 = vector.shape_cast %51 : vector<4xf32> to vector<4x1xf32>
      %c0_41 = arith.constant 0 : index
      %c0_42 = arith.constant 0 : index
      %c0_43 = arith.constant 0 : index
      %c0_44 = arith.constant 0 : index
      %53 = vector.load %arg7[%c0_41, %c0_42, %c0_43, %c0_44] : memref<1x1x4x1xf32, #tpu.memory_space<vmem>>, vector<1x1x4x1xf32>
      %54 = vector.shape_cast %53 : vector<1x1x4x1xf32> to vector<4x1xf32>
      %55 = vector.shape_cast %52 : vector<4x1xf32> to vector<1x1x4x1xf32>
      tpu.vector_store %arg7[%c0_41, %c0_42, %c0_43, %c0_44], %55 {strides = array<i32>} : memref<1x1x4x1xf32, #tpu.memory_space<vmem>>, vector<1x1x4x1xf32>,
    } else {
    }
    return
  }
  func.func @transform_0(%arg0: i32, %arg1: i32, %arg2: i32) -> (i32, i32, i32) {
    %c1_i32 = arith.constant 1 : i32
    %0 = arith.muli %arg1, %c1_i32 : i32
    %1 = arith.addi %0, %arg2 : i32
    %c0_i32 = arith.constant 0 : i32
    %c0_i32_0 = arith.constant 0 : i32
    return %arg0, %c0_i32, %1 : i32, i32, i32
  }
  func.func @transform_1(%arg0: i32, %arg1: i32, %arg2: i32) -> (i32, i32, i32) {
    %c1_i32 = arith.constant 1 : i32
    %0 = arith.muli %arg1, %c1_i32 : i32
    %1 = arith.addi %0, %arg2 : i32
    %c0_i32 = arith.constant 0 : i32
    %c0_i32_0 = arith.constant 0 : i32
    return %arg0, %c0_i32, %1 : i32, i32, i32
  }
  func.func @transform_2(%arg0: i32, %arg1: i32, %arg2: i32) -> (i32, i32, i32, i32) {
    %c0_i32 = arith.constant 0 : i32
    %c0_i32_0 = arith.constant 0 : i32
    %c0_i32_1 = arith.constant 0 : i32
    return %arg0, %arg1, %c0_i32, %c0_i32_0 : i32, i32, i32, i32
  }
  func.func @transform_3(%arg0: i32, %arg1: i32, %arg2: i32) -> (i32, i32, i32, i32) {
    %c0_i32 = arith.constant 0 : i32
    %c0_i32_0 = arith.constant 0 : i32
    %c0_i32_1 = arith.constant 0 : i32
    return %arg0, %arg1, %c0_i32, %c0_i32_0 : i32, i32, i32, i32
  }
  func.func @transform_4(%arg0: i32, %arg1: i32, %arg2: i32) -> (i32, i32, i32, i32) {
    %c0_i32 = arith.constant 0 : i32
    %c0_i32_0 = arith.constant 0 : i32
    %c0_i32_1 = arith.constant 0 : i32
    return %arg0, %arg1, %c0_i32, %c0_i32_0 : i32, i32, i32, i32
  }
}

</mosaic_0001>

<llo_original>
// kernel: tpu_custom_call.1
$region0: #{tpu_custom_call.1}
  #allocation0 [shape = 'u32[]', space=smem, size = 0x4, offset = 0x4, fixed_abs, tag = 'smem constant byte address 0x4 - core index']
  #allocation1 [shape = 'u32[72,128]{1,0:T(1,128)}', space=vmem, size = 0x9000, scoped, tag = 'internal scratch']
  #allocation2 [shape = 'f32[4,256]{1,0:T(4,128)}', space=vmem, size = 0x1000, scoped, tag = 'scratch operand']
  #allocation3 [shape = 'f32[4,256]{1,0:T(4,128)}', space=vmem, size = 0x1000, scoped, tag = 'scratch operand']
  #allocation4 [shape = 'f32[4,256]{1,0:T(4,128)}', space=vmem, size = 0x1000, scoped, tag = 'scratch operand']
  %s0 = inlined_call_operand.hbm [shape: f32[2,4,256], index: 0, kind: input, shape index: {}]
  %s1 = inlined_call_operand.hbm [shape: s32[2,1,256], index: 1, kind: input, shape index: {}]
  %s2 = inlined_call_operand.vmem [shape: f32[2,1,4,1], index: 2, kind: output, shape index: {0}]
  %s3 = inlined_call_operand.vmem [shape: f32[2,1,4,1], index: 3, kind: output, shape index: {1}]
  %s4 = inlined_call_operand.vmem [shape: f32[2,1,4,1], index: 4, kind: output, shape index: {2}]
  %5 = xla_tuple %s2, %s3, %s4
  %s6 = sld [smem:[#allocation0]]
  $region73: #{tpu_custom_call.1} parent=0
    _
  %s8 = ssub.s32 1, %s6
  %s9 = scalar_select 0, %s8, %s6
  $region1: #{tpu_custom_call.1} parent=0
    #allocation5 [shape = 'u8[8192]{0}', space=vmem, size = 0x2000, scoped, tag = 'input window, operand 0']
    #allocation6 [shape = 's32[2]{0}', space=sflag, size = 0x8, scoped, tag = 'scoped memory for tpu_custom_call.1']
    #allocation7 [shape = 'u8[2048]{0}', space=vmem, size = 0x800, scoped, tag = 'input window, operand 1']
    #allocation8 [shape = 's32[2]{0}', space=sflag, size = 0x8, scoped, tag = 'scoped memory for tpu_custom_call.1']
    %10 = vsyncpa [#allocation6], 0
    %s11 = scalar_lea.sflag [#allocation6], 1
    %12 = vsyncpa %s11, 0
    %13 = vsyncpa [#allocation8], 0
    %s14 = scalar_lea.sflag [#allocation8], 1
    %15 = vsyncpa %s14, 0
    loop: start=0, step=1, limit=4
    $region2: #{tpu_custom_call.1} parent=1 // loop_pre_header
      _
    $region3: #{tpu_custom_call.1} parent=1 // loop_header
      %s17 = sphi 0, %s21
      %p18 = scmp.ge.s32.totalorder %s17, 4
      %s24 = sphi 0, %s43
      %s25 = sphi 0, %s39
      %s26 = sphi 0, %s35
      %s27 = sphi 0, %s24
      %s28 = sphi 0, %s25
      %s29 = sphi 0, %s26
      %s30 = sphi 0, %s27
      %s31 = sphi 0, %s28
      %s32 = sphi 0, %s29
      %s50 = sphi 0, %s52
      %s53 = sphi 0, %s50
      %s54 = sphi 0, %s53
      %s70 = sphi 0, %s54
      %s80 = sphi 0, %s82
      %s83 = sphi 0, %s80
      %s84 = sphi 0, %s83
      %s100 = sphi 0, %s84
      %s108 = sphi 0, %s110
      %s111 = sphi 0, %s108
      %s112 = sphi 0, %s111
      %s128 = sphi 0, %s112
      %s136 = sphi 0, %s138
      %s139 = sphi 0, %s136
      %s140 = sphi 0, %s139
      %s156 = sphi 0, %s140
      %s164 = sphi 0, %s166
      %s167 = sphi 0, %s164
      %s168 = sphi 0, %s167
      %s184 = sphi 0, %s168
    $region4: #{tpu_custom_call.1} parent=1 // loop_header_branch
      %20 = sbr.rel (%p18) target = $region8
    $region5: #{tpu_custom_call.1} parent=1 // loop_body
      %s22 = ssub.s32 %s17, 1
      %s23 = ssub.s32 %s17, 2
      %s33 = sadd.s32 1, %s26
      %p34 = scmp.ge.s32.totalorder %s33, 1
      %s35 = scalar_select %p34, 0, %s33
      %s36 = sadd.s32 1, %s25
      %s37 = scalar_select %p34, %s36, %s25
      %p38 = scmp.ge.s32.totalorder %s37, 1
      %s39 = scalar_select %p38, 0, %s37
      %s40 = sadd.s32 1, %s24
      %s41 = scalar_select %p38, %s40, %s24
      %p42 = scmp.ge.s32.totalorder %s41, 2
      %s43 = scalar_select %p42, 0, %s41
      %s44 = sadd.s32 %s25, %s26
      %s45 = sadd.s32 %s39, %s35
      %s46 = ssub.s32 %s24, %s43
      %s47 = ssub.s32 %s44, %s45
      %s48 = sor.u32 %s46, %s47
      %p49 = scmp.eq.s32.totalorder %s48, 0
      %s51 = sadd.s32 %s50, 1
      %s52 = scalar_select %p49, %s50, %s51
      %p55 = pneg %p49
      %p56 = scmp.eq.s32.totalorder %s17, 1
      %p57 = por %p55, %p56
      %p58 = scmp.ne.s32.totalorder %s50, %s53
      %p59 = scmp.eq.s32.totalorder %s17, 0
      %p60 = por %p58, %p59
      %p61 = scmp.ne.s32.totalorder %s50, %s53
      %p62 = scmp.eq.s32.totalorder %s22, 1
      %p63 = por %p61, %p62
      %p64 = scmp.ne.s32.totalorder %s53, %s54
      %p65 = scmp.eq.s32.totalorder %s22, 0
      %p66 = por %p64, %p65
      %p67 = scmp.ne.s32.totalorder %s53, %s54
      %p68 = scmp.eq.s32.totalorder %s23, 1
      %p69 = por %p67, %p68
      %p71 = scmp.ne.s32.totalorder %s54, %s70
      %p72 = scmp.eq.s32.totalorder %s23, 0
      %p73 = por %p71, %p72
      %s74 = sadd.s32 %s25, %s26
      %s75 = sadd.s32 %s39, %s35
      %s76 = ssub.s32 %s24, %s43
      %s77 = ssub.s32 %s74, %s75
      %s78 = sor.u32 %s76, %s77
      %p79 = scmp.eq.s32.totalorder %s78, 0
      %s81 = sadd.s32 %s80, 1
      %s82 = scalar_select %p79, %s80, %s81
      %p85 = pneg %p79
      %p86 = scmp.eq.s32.totalorder %s17, 1
      %p87 = por %p85, %p86
      %p88 = scmp.ne.s32.totalorder %s80, %s83
      %p89 = scmp.eq.s32.totalorder %s17, 0
      %p90 = por %p88, %p89
      %p91 = scmp.ne.s32.totalorder %s80, %s83
      %p92 = scmp.eq.s32.totalorder %s22, 1
      %p93 = por %p91, %p92
      %p94 = scmp.ne.s32.totalorder %s83, %s84
      %p95 = scmp.eq.s32.totalorder %s22, 0
      %p96 = por %p94, %p95
      %p97 = scmp.ne.s32.totalorder %s83, %s84
      %p98 = scmp.eq.s32.totalorder %s23, 1
      %p99 = por %p97, %p98
      %p101 = scmp.ne.s32.totalorder %s84, %s100
      %p102 = scmp.eq.s32.totalorder %s23, 0
      %p103 = por %p101, %p102
      %s104 = ssub.s32 %s24, %s43
      %s105 = ssub.s32 %s25, %s39
      %s106 = sor.u32 %s104, %s105
      %p107 = scmp.eq.s32.totalorder %s106, 0
      %s109 = sadd.s32 %s108, 1
      %s110 = scalar_select %p107, %s108, %s109
      %p113 = pneg %p107
      %p114 = scmp.eq.s32.totalorder %s17, 1
      %p115 = por %p113, %p114
      %p116 = scmp.ne.s32.totalorder %s108, %s111
      %p117 = scmp.eq.s32.totalorder %s17, 0
      %p118 = por %p116, %p117
      %p119 = scmp.ne.s32.totalorder %s108, %s111
      %p120 = scmp.eq.s32.totalorder %s22, 1
      %p121 = por %p119, %p120
      %p122 = scmp.ne.s32.totalorder %s111, %s112
      %p123 = scmp.eq.s32.totalorder %s22, 0
      %p124 = por %p122, %p123
      %p125 = scmp.ne.s32.totalorder %s111, %s112
      %p126 = scmp.eq.s32.totalorder %s23, 1
      %p127 = por %p125, %p126
      %p129 = scmp.ne.s32.totalorder %s112, %s128
      %p130 = scmp.eq.s32.totalorder %s23, 0
      %p131 = por %p129, %p130
      %s132 = ssub.s32 %s24, %s43
      %s133 = ssub.s32 %s25, %s39
      %s134 = sor.u32 %s132, %s133
      %p135 = scmp.eq.s32.totalorder %s134, 0
      %s137 = sadd.s32 %s136, 1
      %s138 = scalar_select %p135, %s136, %s137
      %p141 = pneg %p135
      %p142 = scmp.eq.s32.totalorder %s17, 1
      %p143 = por %p141, %p142
      %p144 = scmp.ne.s32.totalorder %s136, %s139
      %p145 = scmp.eq.s32.totalorder %s17, 0
      %p146 = por %p144, %p145
      %p147 = scmp.ne.s32.totalorder %s136, %s139
      %p148 = scmp.eq.s32.totalorder %s22, 1
      %p149 = por %p147, %p148
      %p150 = scmp.ne.s32.totalorder %s139, %s140
      %p151 = scmp.eq.s32.totalorder %s22, 0
      %p152 = por %p150, %p151
      %p153 = scmp.ne.s32.totalorder %s139, %s140
      %p154 = scmp.eq.s32.totalorder %s23, 1
      %p155 = por %p153, %p154
      %p157 = scmp.ne.s32.totalorder %s140, %s156
      %p158 = scmp.eq.s32.totalorder %s23, 0
      %p159 = por %p157, %p158
      %s160 = ssub.s32 %s24, %s43
      %s161 = ssub.s32 %s25, %s39
      %s162 = sor.u32 %s160, %s161
      %p163 = scmp.eq.s32.totalorder %s162, 0
      %s165 = sadd.s32 %s164, 1
      %s166 = scalar_select %p163, %s164, %s165
      %p169 = pneg %p163
      %p170 = scmp.eq.s32.totalorder %s17, 1
      %p171 = por %p169, %p170
      %p172 = scmp.ne.s32.totalorder %s164, %s167
      %p173 = scmp.eq.s32.totalorder %s17, 0
      %p174 = por %p172, %p173
      %p175 = scmp.ne.s32.totalorder %s164, %s167
      %p176 = scmp.eq.s32.totalorder %s22, 1
      %p177 = por %p175, %p176
      %p178 = scmp.ne.s32.totalorder %s167, %s168
      %p179 = scmp.eq.s32.totalorder %s22, 0
      %p180 = por %p178, %p179
      %p181 = scmp.ne.s32.totalorder %s167, %s168
      %p182 = scmp.eq.s32.totalorder %s23, 1
      %p183 = por %p181, %p182
      %p185 = scmp.ne.s32.totalorder %s168, %s184
      %p186 = scmp.eq.s32.totalorder %s23, 0
      %p187 = por %p185, %p186
      %p188 = scmp.le.s32.totalorder 1, %s17
      %p189 = scmp.lt.s32.totalorder %s17, 3
      %p190 = pnand %p188, %p189
      %p191 = pneg %p190
      // Predicated region
      $region9: #{tpu_custom_call.1} parent=5 // pred_check
        _
      $region10: #{tpu_custom_call.1} parent=5 // pred_check_branch
        %193 = sbr.rel (%p190) target = $region12
      $region11: #{tpu_custom_call.1} parent=5 // pred_region
        %s194 = ssub.s32 %s17, 1
      $region12: #{tpu_custom_call.1} parent=5 // pred_fallthru
        _
      %p195 = scmp.lt.s32.totalorder %s17, 2
      // Predicated region
      $region13: #{tpu_custom_call.1} parent=5 // pred_check
        %p196 = pneg %p195
      $region14: #{tpu_custom_call.1} parent=5 // pred_check_branch
        %198 = sbr.rel (%p196) target = $region16
      $region15: #{tpu_custom_call.1} parent=5 // pred_region
        // Predicated region
        $region17: #{tpu_custom_call.1} parent=15 // pred_check
          %p199 = pneg %p60
        $region18: #{tpu_custom_call.1} parent=15 // pred_check_branch
          %201 = sbr.rel (%p199) target = $region20
        $region19: #{tpu_custom_call.1} parent=15 // pred_region
          %s202 = sand.u32 %s50, 1
          %s203 = scalar_lea.sflag [#allocation6], %s202
          %s204 = sand.u32 %s50, 1
          %s205 = smul.addr %s204, 8
          %s206 = scalar_lea.vmem [#allocation5], %s205
          %s207 = sadd.s32 %s25, %s26
          %s208 = smul.u32 2, %s207
          %210 = vsyncadd %s203, 0
          %s211 = smul.addr %s24, 2
          %s212 = sadd.s32 %s208, %s211
          %s213 = smul.addr %s212, 4
          %s214 = scalar_lea.hbm %s0, %s213
          %s216 = sshll.u32 %s214, 4
          %s217 = int_to_ptr.hbm [resolvable:$true] %s216
          %s218 = sshll.u32 %s206, 4
          %s219 = int_to_ptr.vmem [resolvable:$true] %s218
          %221 = dma.hbm_to_vmem [thread:$0]  %s217, 128, %s219, %s203
        $region20: #{tpu_custom_call.1} parent=15 // pred_fallthru
          _
        // Predicated region
        $region21: #{tpu_custom_call.1} parent=15 // pred_check
          %p222 = pneg %p90
        $region22: #{tpu_custom_call.1} parent=15 // pred_check_branch
          %224 = sbr.rel (%p222) target = $region24
        $region23: #{tpu_custom_call.1} parent=15 // pred_region
          %s225 = sand.u32 %s80, 1
          %s226 = scalar_lea.sflag [#allocation8], %s225
          %s227 = sand.u32 %s80, 1
          %s228 = smul.addr %s227, 2
          %s229 = scalar_lea.vmem [#allocation7], %s228
          %s230 = sadd.s32 %s25, %s26
          %s231 = smul.u32 2, %s230
          %233 = vsyncadd %s226, 0
          %s234 = smul.addr %s24, 2
          %s235 = sadd.s32 %s231, %s234
          %s236 = scalar_lea.hbm %s1, %s235
          %s238 = sshll.u32 %s236, 4
          %s239 = int_to_ptr.hbm [resolvable:$true] %s238
          %s240 = sshll.u32 %s229, 4
          %s241 = int_to_ptr.vmem [resolvable:$true] %s240
          %243 = dma.hbm_to_vmem [thread:$0]  %s239, 32, %s241, %s226
        $region24: #{tpu_custom_call.1} parent=15 // pred_fallthru
          _
      $region16: #{tpu_custom_call.1} parent=5 // pred_fallthru
        _
      %p244 = scmp.le.s32.totalorder 1, %s17
      %p245 = scmp.lt.s32.totalorder %s17, 3
      %p246 = pnand %p244, %p245
      %p247 = pneg %p246
      // Predicated region
      $region25: #{tpu_custom_call.1} parent=5 // pred_check
        _
      $region26: #{tpu_custom_call.1} parent=5 // pred_check_branch
        %249 = sbr.rel (%p246) target = $region28
      $region27: #{tpu_custom_call.1} parent=5 // pred_region
        %s250 = ssub.s32 %s17, 1
        %s251 = sand.u32 %s53, 1
        %s252 = scalar_lea.sflag [#allocation6], %s251
        %s253 = sand.u32 %s53, 1
        %s254 = smul.addr %s253, 8
        %s255 = scalar_lea.vmem [#allocation5], %s254
        // Predicated region
        $region29: #{tpu_custom_call.1} parent=27 // pred_check
          %p256 = pneg %p66
        $region30: #{tpu_custom_call.1} parent=27 // pred_check_branch
          %258 = sbr.rel (%p256) target = $region32
        $region31: #{tpu_custom_call.1} parent=27 // pred_region
          %260 = dma.done %s252, 128
        $region32: #{tpu_custom_call.1} parent=27 // pred_fallthru
          _
        %s261 = sand.u32 %s83, 1
        %s262 = scalar_lea.sflag [#allocation8], %s261
        %s263 = sand.u32 %s83, 1
        %s264 = smul.addr %s263, 2
        %s265 = scalar_lea.vmem [#allocation7], %s264
        // Predicated region
        $region33: #{tpu_custom_call.1} parent=27 // pred_check
          %p266 = pneg %p96
        $region34: #{tpu_custom_call.1} parent=27 // pred_check_branch
          %268 = sbr.rel (%p266) target = $region36
        $region35: #{tpu_custom_call.1} parent=27 // pred_region
          %270 = dma.done %s262, 32
        $region36: #{tpu_custom_call.1} parent=27 // pred_fallthru
          _
        %s271 = sand.u32 %s53, 1
        %s272 = scalar_lea.sflag [#allocation6], %s271
        %s273 = sand.u32 %s53, 1
        %s274 = smul.addr %s273, 8
        %s275 = scalar_lea.vmem [#allocation5], %s274
        %p276 = pneg %p66
        %p277 = pneg %p63
        %s278 = sand.u32 %s83, 1
        %s279 = scalar_lea.sflag [#allocation8], %s278
        %s280 = sand.u32 %s83, 1
        %s281 = smul.addr %s280, 2
        %s282 = scalar_lea.vmem [#allocation7], %s281
        %p283 = pneg %p96
        %p284 = pneg %p93
        %p285 = pneg %p124
        %p286 = pneg %p121
        %p287 = scmp.lt.s32.totalorder %s27, 1
        %s288 = scalar_select %p287, %s27, 1
        %p289 = scmp.lt.s32.totalorder %s28, 0
        %s290 = scalar_select %p289, %s28, 0
        %s291 = sadd.s32 %s290, %s288
        %s292 = smul.addr %s291, 4
        %s293 = scalar_lea.vmem %s2, %s292
        %p294 = pneg %p152
        %p295 = pneg %p149
        %p296 = scmp.lt.s32.totalorder %s27, 1
        %s297 = scalar_select %p296, %s27, 1
        %p298 = scmp.lt.s32.totalorder %s28, 0
        %s299 = scalar_select %p298, %s28, 0
        %s300 = sadd.s32 %s299, %s297
        %s301 = smul.addr %s300, 4
        %s302 = scalar_lea.vmem %s3, %s301
        %p303 = pneg %p180
        %p304 = pneg %p177
        %p305 = scmp.lt.s32.totalorder %s27, 1
        %s306 = scalar_select %p305, %s27, 1
        %p307 = scmp.lt.s32.totalorder %s28, 0
        %s308 = scalar_select %p307, %s28, 0
        %s309 = sadd.s32 %s308, %s306
        %s310 = smul.addr %s309, 4
        %s311 = scalar_lea.vmem %s4, %s310
        %s312 = sadd.s32 %s28, %s29
        %s313 = smul.u32 2, %s312
        %s314 = sadd.s32 %s28, %s29
        %s315 = smul.u32 2, %s314
        %p316 = scmp.lt.s32.totalorder %s27, 1
        %s317 = scalar_select %p316, %s27, 1
        %p318 = scmp.lt.s32.totalorder %s28, 0
        %s319 = scalar_select %p318, %s28, 0
        %s320 = sadd.s32 %s319, %s317
        %s321 = smul.addr %s320, 4
        %s322 = scalar_lea.vmem %s2, %s321
        %p323 = scmp.lt.s32.totalorder %s27, 1
        %s324 = scalar_select %p323, %s27, 1
        %p325 = scmp.lt.s32.totalorder %s28, 0
        %s326 = scalar_select %p325, %s28, 0
        %s327 = sadd.s32 %s326, %s324
        %s328 = smul.addr %s327, 4
        %s329 = scalar_lea.vmem %s3, %s328
        %p330 = scmp.lt.s32.totalorder %s27, 1
        %s331 = scalar_select %p330, %s27, 1
        %p332 = scmp.lt.s32.totalorder %s28, 0
        %s333 = scalar_select %p332, %s28, 0
        %s334 = sadd.s32 %s333, %s331
        %s335 = smul.addr %s334, 4
        %s336 = scalar_lea.vmem %s4, %s335
        %p337 = scmp.eq.s32.totalorder %s29, 0
        // Predicated region
        $region37: #{tpu_custom_call.1} parent=27 // pred_check
          %p338 = pneg %p337
        $region38: #{tpu_custom_call.1} parent=27 // pred_check_branch
          %340 = sbr.rel (%p338) target = $region40
        $region39: #{tpu_custom_call.1} parent=27 // pred_region
          %341 = vst [vmem:[#allocation2] sm:$0xff] 0.0
          %342 = vst [vmem:[#allocation3] sm:$0xff] 0.0
          %343 = vst [vmem:[#allocation4] sm:$0xff] 0.0
        $region40: #{tpu_custom_call.1} parent=27 // pred_fallthru
          _
        %v344 = vld [vmem:[%s255] sm:$0xff]
        %346 = vst [vmem:[#allocation1] ss:$2 sm:$0xff] %v344
        %v347 = vld.sshfl [vmem:[#allocation1] sm:$0xff pattern:$0x75316420]
        %v348 = vld.sshfl [vmem:[#allocation1 + $0x8] sm:$0xff pattern:$0x75316420]
        %vm351 = vcmask 1043456
        %v352 = vsel %vm351, %v347, -inf
        %v353 = vrot.slane %v352, 4
        %v354 = vmax.f32 %v352, %v353
        %v355 = vrot.slane %v354, 2
        %v356 = vmax.f32 %v354, %v355
        %v357 = vrot.slane %v356, 1
        %v358 = vmax.f32 %v356, %v357
        %v359 = vsel %vm351, %v348, -inf
        %v360 = vrot.slane %v359, 4
        %v361 = vmax.f32 %v359, %v360
        %v362 = vrot.slane %v361, 2
        %v363 = vmax.f32 %v361, %v362
        %v364 = vrot.slane %v363, 1
        %v365 = vmax.f32 %v363, %v364
        %v368 = vrot.slane %v365, 4
        %v369 = vsel %vm351, %v358, %v368
        %v371 = vsub.f32 %v344, %v369
        %v372 = vmul.f32 %v371, 1.442695
        %v373 = vpow.pop %v372
        %375 = vst [vmem:[#allocation1] ss:$2 sm:$0xff] %v373
        %v376 = vld.sshfl [vmem:[#allocation1] sm:$0xff pattern:$0x75316420]
        %v377 = vld.sshfl [vmem:[#allocation1 + $0x8] sm:$0xff pattern:$0x75316420]
        %v380 = vsel %vm351, %v376, 0.0
        %v381 = vrot.slane %v380, 4
        %v382 = vadd.f32 %v380, %v381
        %v383 = vrot.slane %v382, 2
        %v384 = vadd.f32 %v382, %v383
        %v385 = vrot.slane %v384, 1
        %v386 = vadd.f32 %v384, %v385
        %v387 = vsel %vm351, %v377, 0.0
        %v388 = vrot.slane %v387, 4
        %v389 = vadd.f32 %v387, %v388
        %v390 = vrot.slane %v389, 2
        %v391 = vadd.f32 %v389, %v390
        %v392 = vrot.slane %v391, 1
        %v393 = vadd.f32 %v391, %v392
        %v394 = vrcp.pop %v386
        %v395 = vrcp.pop %v393
        %v398 = vrot.slane %v395, 4
        %v399 = vsel %vm351, %v394, %v398
        %v401 = vmul.f32 %v373, %v399
        %v402 = vld [vmem:[%s265] sm:$0x3]
        %v403 = vlaneseq
        %v404 = vshrl.u32 %v403, 7
        %v405 = vperm.slane %v402, 0
        %v406 = vperm.slane %v402, 1
        %vm407 = vcmp.eq.s32.totalorder %v404, %v405
        %vm408 = vcmp.eq.s32.totalorder %v404, %v406
        %v409 = vld [vmem:[#allocation2] sm:$0xff]
        %411 = vst [vmem:[#allocation1] ss:$2 sm:$0xff] %v401
        %v412 = vld.sshfl [vmem:[#allocation1] sm:$0xff pattern:$0x75316420]
        %v413 = vld.sshfl [vmem:[#allocation1 + $0x8] sm:$0xff pattern:$0x75316420]
        %v416 = vsel %vm407, %v412, 0.0
        %v417 = vsel %vm408, %v413, 0.0
        %v420 = vrot.slane %v417, 4
        %v421 = vsel %vm351, %v416, %v420
        %v423 = vadd.f32 %v409, %v421
        %424 = vst [vmem:[#allocation2] sm:$0xff] %v423
        %v425 = vld [vmem:[#allocation4] sm:$0xff]
        %v426 = vsel %vm407, 1.0, 0.0
        %v427 = vsel %vm408, 1.0, 0.0
        %v430 = vrot.slane %v427, 4
        %v431 = vsel %vm351, %v426, %v430
        %v433 = vadd.f32 %v425, %v431
        %434 = vst [vmem:[#allocation4] sm:$0xff] %v433
        %v435 = vld [vmem:[#allocation3] sm:$0xff]
        %v436 = vadd.f32 %v435, %v401
        %437 = vst [vmem:[#allocation3] sm:$0xff] %v436
        // Predicated region
        $region41: #{tpu_custom_call.1} parent=27 // pred_check
          %p438 = pneg %p337
        $region42: #{tpu_custom_call.1} parent=27 // pred_check_branch
          %440 = sbr.rel (%p438) target = $region44
        $region43: #{tpu_custom_call.1} parent=27 // pred_region
          %v441 = vld [vmem:[#allocation2] sm:$0xff]
          %443 = vst [vmem:[#allocation1] ss:$2 sm:$0xff] %v441
          %v444 = vld.sshfl [vmem:[#allocation1] sm:$0xff pattern:$0x75316420]
          %v445 = vld.sshfl [vmem:[#allocation1 + $0x8] sm:$0xff pattern:$0x75316420]
          %v448 = vsel %vm351, %v444, 0.0
          %v449 = vsel %vm351, %v445, 0.0
          %v450 = vadd.f32 %v448, %v449
          %451 = vadd.xlane.f32.xlu0 %v450
          %v452 = vpop.xlane.xlu0 %451
          %vm453 = vcmask 3072
          %454 = vst.msk [vmem:[%s322] sm:$0xf] %vm453, %v452
          %v455 = vld [vmem:[#allocation3] sm:$0xff]
          %457 = vst [vmem:[#allocation1] ss:$2 sm:$0xff] %v455
          %v458 = vld.sshfl [vmem:[#allocation1] sm:$0xff pattern:$0x75316420]
          %v459 = vld.sshfl [vmem:[#allocation1 + $0x8] sm:$0xff pattern:$0x75316420]
          %v462 = vsel %vm351, %v458, 0.0
          %v463 = vsel %vm351, %v459, 0.0
          %v464 = vadd.f32 %v462, %v463
          %465 = vadd.xlane.f32.xlu0 %v464
          %v466 = vpop.xlane.xlu0 %465
          %467 = vst.msk [vmem:[%s329] sm:$0xf] %vm453, %v466
          %v468 = vld [vmem:[#allocation4] sm:$0xff]
          %470 = vst [vmem:[#allocation1] ss:$2 sm:$0xff] %v468
          %v471 = vld.sshfl [vmem:[#allocation1] sm:$0xff pattern:$0x75316420]
          %v472 = vld.sshfl [vmem:[#allocation1 + $0x8] sm:$0xff pattern:$0x75316420]
          %v475 = vsel %vm351, %v471, 0.0
          %v476 = vsel %vm351, %v472, 0.0
          %v477 = vadd.f32 %v475, %v476
          %478 = vadd.xlane.f32.xlu0 %v477
          %v479 = vpop.xlane.xlu0 %478
          %480 = vst.msk [vmem:[%s336] sm:$0xf] %vm453, %v479
        $region44: #{tpu_custom_call.1} parent=27 // pred_fallthru
          _
        %p481 = scmp.lt.s32.totalorder %s27, 1
        %s482 = scalar_select %p481, %s27, 1
        %p483 = scmp.lt.s32.totalorder %s28, 0
        %s484 = scalar_select %p483, %s28, 0
        %s485 = sadd.s32 %s484, %s482
        %s486 = smul.addr %s485, 4
        %s487 = scalar_lea.vmem %s2, %s486
        %p488 = scmp.lt.s32.totalorder %s27, 1
        %s489 = scalar_select %p488, %s27, 1
        %p490 = scmp.lt.s32.totalorder %s28, 0
        %s491 = scalar_select %p490, %s28, 0
        %s492 = sadd.s32 %s491, %s489
        %s493 = smul.addr %s492, 4
        %s494 = scalar_lea.vmem %s3, %s493
        %p495 = scmp.lt.s32.totalorder %s27, 1
        %s496 = scalar_select %p495, %s27, 1
        %p497 = scmp.lt.s32.totalorder %s28, 0
        %s498 = scalar_select %p497, %s28, 0
        %s499 = sadd.s32 %s498, %s496
        %s500 = smul.addr %s499, 4
        %s501 = scalar_lea.vmem %s4, %s500
        // Predicated region
        $region45: #{tpu_custom_call.1} parent=27 // pred_check
          %p502 = pneg %p121
        $region46: #{tpu_custom_call.1} parent=27 // pred_check_branch
          %504 = sbr.rel (%p502) target = $region48
        $region47: #{tpu_custom_call.1} parent=27 // pred_region
          _
        $region48: #{tpu_custom_call.1} parent=27 // pred_fallthru
          _
        // Predicated region
        $region49: #{tpu_custom_call.1} parent=27 // pred_check
          %p505 = pneg %p149
        $region50: #{tpu_custom_call.1} parent=27 // pred_check_branch
          %507 = sbr.rel (%p505) target = $region52
        $region51: #{tpu_custom_call.1} parent=27 // pred_region
          _
        $region52: #{tpu_custom_call.1} parent=27 // pred_fallthru
          _
        // Predicated region
        $region53: #{tpu_custom_call.1} parent=27 // pred_check
          %p508 = pneg %p177
        $region54: #{tpu_custom_call.1} parent=27 // pred_check_branch
          %510 = sbr.rel (%p508) target = $region56
        $region55: #{tpu_custom_call.1} parent=27 // pred_region
          _
        $region56: #{tpu_custom_call.1} parent=27 // pred_fallthru
          _
      $region28: #{tpu_custom_call.1} parent=5 // pred_fallthru
        _
      %p511 = scmp.le.s32.totalorder 2, %s17
      // Predicated region
      $region57: #{tpu_custom_call.1} parent=5 // pred_check
        %p512 = pneg %p511
      $region58: #{tpu_custom_call.1} parent=5 // pred_check_branch
        %514 = sbr.rel (%p512) target = $region60
      $region59: #{tpu_custom_call.1} parent=5 // pred_region
        %s515 = ssub.s32 %s17, 2
        // Predicated region
        $region61: #{tpu_custom_call.1} parent=59 // pred_check
          %p516 = pneg %p127
        $region62: #{tpu_custom_call.1} parent=59 // pred_check_branch
          %518 = sbr.rel (%p516) target = $region64
        $region63: #{tpu_custom_call.1} parent=59 // pred_region
          %p519 = scmp.lt.s32.totalorder %s30, 1
          %s520 = scalar_select %p519, %s30, 1
          %p521 = scmp.lt.s32.totalorder %s31, 0
          %s522 = scalar_select %p521, %s31, 0
          %s523 = sadd.s32 %s522, %s520
          %s524 = smul.addr %s523, 4
          %s525 = scalar_lea.vmem %s2, %s524
        $region64: #{tpu_custom_call.1} parent=59 // pred_fallthru
          _
        // Predicated region
        $region65: #{tpu_custom_call.1} parent=59 // pred_check
          %p526 = pneg %p155
        $region66: #{tpu_custom_call.1} parent=59 // pred_check_branch
          %528 = sbr.rel (%p526) target = $region68
        $region67: #{tpu_custom_call.1} parent=59 // pred_region
          %p529 = scmp.lt.s32.totalorder %s30, 1
          %s530 = scalar_select %p529, %s30, 1
          %p531 = scmp.lt.s32.totalorder %s31, 0
          %s532 = scalar_select %p531, %s31, 0
          %s533 = sadd.s32 %s532, %s530
          %s534 = smul.addr %s533, 4
          %s535 = scalar_lea.vmem %s3, %s534
        $region68: #{tpu_custom_call.1} parent=59 // pred_fallthru
          _
        // Predicated region
        $region69: #{tpu_custom_call.1} parent=59 // pred_check
          %p536 = pneg %p183
        $region70: #{tpu_custom_call.1} parent=59 // pred_check_branch
          %538 = sbr.rel (%p536) target = $region72
        $region71: #{tpu_custom_call.1} parent=59 // pred_region
          %p539 = scmp.lt.s32.totalorder %s30, 1
          %s540 = scalar_select %p539, %s30, 1
          %p541 = scmp.lt.s32.totalorder %s31, 0
          %s542 = scalar_select %p541, %s31, 0
          %s543 = sadd.s32 %s542, %s540
          %s544 = smul.addr %s543, 4
          %s545 = scalar_lea.vmem %s4, %s544
        $region72: #{tpu_custom_call.1} parent=59 // pred_fallthru
          _
      $region60: #{tpu_custom_call.1} parent=5 // pred_fallthru
        _
    $region6: #{tpu_custom_call.1} parent=1 // loop_footer
      %s21 = sadd.s32 1, %s17
    $region7: #{tpu_custom_call.1} parent=1 // loop_footer_branch
      %16 = sbr.rel target = $region3
    $region8: #{tpu_custom_call.1} parent=1 // loop_exit
      _
    %546 = vsyncpa [#allocation6], 1
    %s547 = scalar_lea.sflag [#allocation6], 1
    %548 = vsyncpa %s547, 1
    %549 = vsyncpa [#allocation8], 1
    %s550 = scalar_lea.sflag [#allocation8], 1
    %551 = vsyncpa %s550, 1

</llo_original>
